<compile_context>
chip_gen: v7x
topology: tpu7x:2x2x1
jax: 0.10.0
libtpu: 0.0.40
codegen_flags: <defaults>
</compile_context>

<pallas_src>
import functools
import math

import numpy as np
import jax
import jax.numpy as jnp
from jax import lax
from jax.experimental import pallas as pl
from jax.experimental.pallas import tpu as pltpu

NUM_CLASSES = 3
C_PRED = NUM_CLASSES + 4              # 7  (cls-3, box-4)
GDIM = NUM_CLASSES + 4 + 1 + 4        # 12 (cls, txywh, conf, gltrb)
EPS16 = float(np.finfo(np.float16).eps)   # torch.finfo(torch.float16).eps
IOU_EPS = 1e-7
TB = 8                                # images per grid step (one sublane slab)


def _atan(x):
    """Branchless float32 atan (Cephes-style polynomial)."""
    sgn = jnp.where(x < 0.0, -1.0, 1.0)
    ax = jnp.abs(x)
    t3 = ax > 2.414213562373095     # tan(3*pi/8)
    t1 = ax > 0.4142135623730951    # tan(pi/8)
    y0 = jnp.where(t3, np.float32(np.pi / 2.0),
                   jnp.where(t1, np.float32(np.pi / 4.0), 0.0))
    safe = jnp.maximum(ax, 1e-30)
    xr = jnp.where(t3, -1.0 / safe,
                   jnp.where(t1, (ax - 1.0) / (ax + 1.0), ax))
    z = xr * xr
    p = (((8.05374449538e-2 * z - 1.38776856032e-1) * z + 1.99777106478e-1) * z
         - 3.33329491539e-1)
    return sgn * (y0 + p * z * xr + xr)


def _loss_kernel(const_ref, p_ref, g_ref, out_ref, *, num_classes, inv_grid):
    # Blocks (channels-first, batch on sublanes, HW lane-dense):
    #   p_ref: (C=7,  TB, HWp), g_ref: (GDIM=12, TB, HWp), const_ref: (8, HWp)
    nc = num_classes
    p = p_ref[...].astype(jnp.float32)
    g = g_ref[...].astype(jnp.float32)
    tb = p.shape[1]

    gx_off = const_ref[0:1, :]                 # (1, HWp) cell column offsets
    gy_off = const_ref[1:2, :]                 # (1, HWp) cell row offsets
    valid_f = const_ref[2:3, :]                # (1, HWp) valid-lane mask (HW padding)
    valid_b = valid_f > 0.5

    x_cls = p[0:nc]                            # (nc, TB, HWp) class logits
    gcls = g[0:nc]                             # (nc, TB, HWp)

    # mask_pos_2d: any class target > 0 (padded lanes / padded rows are 0)
    mask_pos_f = (jnp.max(gcls, axis=0) > 0.0).astype(jnp.float32)    # (TB, HWp)
    pos_cnt = jnp.sum(mask_pos_f, axis=-1, keepdims=True)             # (TB, 1)
    nums_pos = jnp.maximum(pos_cnt, EPS16)                            # (TB, 1)

    # ---------------- focal cls loss (alpha=0.75, gamma=2), logit space ------
    alpha = 0.75
    pc = jax.nn.sigmoid(x_cls)                                        # (nc, TB, HWp)
    l1pe = jnp.log(1.0 + jnp.exp(-jnp.abs(x_cls)))
    log_pc = jnp.minimum(x_cls, 0.0) - l1pe        # log sigmoid(x)
    log_1mpc = -jnp.maximum(x_cls, 0.0) - l1pe     # log(1 - sigmoid(x))
    one_m_pc = 1.0 - pc
    l_pos = (-alpha) * (one_m_pc * one_m_pc) * log_pc * gcls * mask_pos_f
    l_neg = (-(1.0 - alpha)) * (pc * pc) * log_1mpc * (1.0 - gcls) * \
            ((1.0 - mask_pos_f) * valid_f)
    # class-axis sum is cheap (leading axis); lane reduce goes to the XLU once
    l_pos_sum = jnp.sum(jnp.sum(l_pos, axis=0), axis=-1, keepdims=True)   # (TB,1)
    l_neg_sum = jnp.sum(jnp.sum(l_neg, axis=0), axis=-1, keepdims=True)   # (TB,1)

    # ---------------- YOLOv1 box decode ----------------
    px = (jax.nn.sigmoid(p[nc + 0]) + gx_off) * inv_grid              # (TB, HWp)
    py = (jax.nn.sigmoid(p[nc + 1]) + gy_off) * inv_grid
    pw = jnp.exp(p[nc + 2]) * inv_grid
    ph = jnp.exp(p[nc + 3]) * inv_grid
    pw_h = pw * 0.5
    ph_h = ph * 0.5
    zl = px - pw_h
    zt = py - ph_h
    zr = px + pw_h
    zb = py + ph_h

    off = nc + 5                                                       # gltrb
    gl = g[off + 0]
    gt = g[off + 1]
    gr = g[off + 2]
    gb = g[off + 3]

    # ---------------- CIoU (zero-padded g boxes stay finite, masked anyway) --
    iw = jnp.maximum(jnp.minimum(zr, gr) - jnp.maximum(zl, gl), 0.0)
    ih = jnp.maximum(jnp.minimum(zb, gb) - jnp.maximum(zt, gt), 0.0)
    inter = iw * ih
    w2 = gr - gl
    h2 = gb - gt
    union = pw * ph + w2 * h2 - inter + IOU_EPS       # w1 == pw, h1 == ph exactly
    iou = inter / union
    cw = jnp.maximum(zr, gr) - jnp.minimum(zl, gl)
    ch = jnp.maximum(zb, gb) - jnp.minimum(zt, gt)
    c2 = cw * cw + ch * ch + IOU_EPS
    gcx = (gl + gr) * 0.5
    gcy = (gt + gb) * 0.5
    rho2 = jnp.square(gcx - px) + jnp.square(gcy - py)
    v = (4.0 / (np.pi ** 2)) * jnp.square(
        _atan(w2 / jnp.maximum(h2, 1e-9)) - _atan(pw / jnp.maximum(ph, 1e-9)))
    # TODO(synk): alpha_c is usually under stop_gradient in training; forward-only here.
    alpha_c = v / (v - iou + (1.0 + IOU_EPS))
    ciou = iou - (rho2 / c2 + v * alpha_c)

    reg_sum = jnp.sum((1.0 - ciou) * mask_pos_f, axis=-1, keepdims=True)   # (TB,1)

    # ---------------- pcls stats for log (padded lanes excluded) ------------
    pc_max_c = jnp.max(pc, axis=0)                                     # (TB, HWp)
    pc_min_c = jnp.min(pc, axis=0)
    pc_sum_c = jnp.sum(pc, axis=0)
    pmax = jnp.max(jnp.where(valid_b, pc_max_c, -1.0), axis=-1, keepdims=True)
    pmin = jnp.min(jnp.where(valid_b, pc_min_c, 2.0), axis=-1, keepdims=True)
    psum = jnp.sum(pc_sum_c * valid_f, axis=-1, keepdims=True)

    # Single lane-dense (TB, 128) store of all per-image partials.
    stats = (l_pos_sum, l_neg_sum, nums_pos, reg_sum, pos_cnt, pmax, pmin, psum)
    lane128 = lax.broadcasted_iota(jnp.int32, (1, 128), 1)
    vec = jnp.zeros((tb, 128), jnp.float32)
    for k, s in enumerate(stats):
        vec = jnp.where(lane128 == k, s, vec)
    out_ref[...] = vec


def loss_yolov1_cr(pyolos_nchw, gyolos_bhwg):
    """Forward of LossYOLOv1_cr. Returns (loss_total, log_dict)."""
    B, C, H, W = pyolos_nchw.shape
    HW = H * W
    HWp = max(((HW + 127) // 128) * 128, 128)
    B_pad = ((B + TB - 1) // TB) * TB

    # Channels-first with batch on the sublane axis: (C, B, HW) / (GDIM, B, HW).
    p = jnp.transpose(pyolos_nchw.reshape(B, C, HW), (1, 0, 2))
    g = jnp.transpose(gyolos_bhwg.reshape(B, HW, GDIM), (2, 0, 1))
    p = jnp.pad(p, ((0, 0), (0, B_pad - B), (0, HWp - HW)))
    g = jnp.pad(g, ((0, 0), (0, B_pad - B), (0, HWp - HW)))

    # Grid-invariant constants computed once (exact integer arithmetic).
    idx = np.arange(HWp)
    const_np = np.zeros((8, HWp), np.float32)
    const_np[0] = (idx % W).astype(np.float32)   # gx_off (cell column)
    const_np[1] = (idx // W).astype(np.float32)  # gy_off (cell row)
    const_np[2] = (idx < HW).astype(np.float32)  # valid-lane mask
    const = jnp.asarray(const_np)

    part = pl.pallas_call(
        functools.partial(_loss_kernel, num_classes=NUM_CLASSES,
                          inv_grid=1.0 / float(H)),
        out_shape=jax.ShapeDtypeStruct((B_pad, 128), jnp.float32),
        grid=(B_pad // TB,),
        in_specs=[
            pl.BlockSpec((8, HWp), lambda b: (0, 0)),         # resident constants
            pl.BlockSpec((C, TB, HWp), lambda b: (0, b, 0)),  # predictions slab
            pl.BlockSpec((GDIM, TB, HWp), lambda b: (0, b, 0)),  # targets slab
        ],
        out_specs=pl.BlockSpec((TB, 128), lambda b: (b, 0)),
        compiler_params=pltpu.CompilerParams(
            dimension_semantics=("parallel",)),
    )(const, p, g)

    part = part[:B]                         # drop padded batch rows
    l_pos_sum = part[:, 0]
    l_neg_sum = part[:, 1]
    nums_pos = part[:, 2]
    reg_sum = part[:, 3]
    pos_cnt = part[:, 4]

    l_cls_pos = jnp.mean(l_pos_sum / nums_pos) * 30.0
    l_cls_neg = jnp.mean(l_neg_sum / nums_pos) * 30.0
    # Global mean of (1 - ciou) over ALL positives (matches pyolos[mask_pos_2d]
    # flattening).  TODO(synk): torch would NaN on a batch with zero positives;
    # we clamp the denominator to stay finite.
    l_reg = jnp.sum(reg_sum) / jnp.maximum(jnp.sum(pos_cnt), 1.0)
    loss_total = l_cls_pos + l_cls_neg + l_reg

    log_dict = {
        "l_total": loss_total,
        "l_cls_pos": l_cls_pos,
        "l_cls_neg": l_cls_neg,
        "l_reg": l_reg,
        "p_max": jnp.max(part[:, 5]),
        "p_min": jnp.min(part[:, 6]),
        "p_mean": jnp.sum(part[:, 7]) / (B * HW * NUM_CLASSES),
    }
    return loss_total, log_dict


def fmatch4yolov1_np(gboxes_ltrb, glabels, grid, gdim, num_classes):
    """Plain-numpy target assignment (glue; matches the gyolos layout the loss reads)."""
    gy = np.zeros((grid, grid, gdim), np.float32)
    for box, lab in zip(np.asarray(gboxes_ltrb), np.asarray(glabels)):
        l, t, r, b = [float(v) for v in box]
        cx, cy = (l + r) / 2.0, (t + b) / 2.0
        w, h = max(r - l, 1e-6), max(b - t, 1e-6)
        col = min(int(cx * grid), grid - 1)
        row = min(int(cy * grid), grid - 1)
        gy[row, col, :] = 0.0
        gy[row, col, int(lab)] = 1.0                      # one-hot class
        gy[row, col, num_classes + 0] = cx * grid - col   # txy
        gy[row, col, num_classes + 1] = cy * grid - row
        gy[row, col, num_classes + 2] = math.log(w * grid)
        gy[row, col, num_classes + 3] = math.log(h * grid)
        gy[row, col, num_classes + 4] = 1.0               # conf
        gy[row, col, num_classes + 5:num_classes + 9] = [l, t, r, b]  # gltrb
    return gy


if __name__ == "__main__":
    key = jax.random.PRNGKey(0)
    B, H, W = 2, 13, 13
    k1, k2, k3, k4 = jax.random.split(key, 4)

    # network predictions: NCHW [B, 7, 13, 13]
    pyolos = jax.random.normal(k1, (B, C_PRED, H, W), dtype=jnp.float32)

    # deterministic synthetic targets: 2 boxes / image (normalized ltrb), labels in [0, 3)
    centers = np.asarray(jax.random.uniform(k2, (B, 2, 2), minval=0.15, maxval=0.85))
    sizes = np.asarray(jax.random.uniform(k3, (B, 2, 2), minval=0.08, maxval=0.25))
    labels = np.asarray(jax.random.randint(k4, (B, 2), 0, NUM_CLASSES))

    gyolos = np.zeros((B, H, W, GDIM), np.float32)
    for i in range(B):
        ltrb = np.concatenate(
            [np.clip(centers[i] - sizes[i] / 2.0, 0.0, 1.0),
             np.clip(centers[i] + sizes[i] / 2.0, 0.0, 1.0)], axis=-1)
        gyolos[i] = fmatch4yolov1_np(ltrb, labels[i], H, GDIM, NUM_CLASSES)

    loss_total, log_dict = loss_yolov1_cr(pyolos, jnp.asarray(gyolos))
    jax.block_until_ready(loss_total)
    assert np.isfinite(float(loss_total)), "loss is not finite"
    for k in ("l_cls_pos", "l_cls_neg", "l_reg", "p_max", "p_min", "p_mean"):
        assert np.isfinite(float(log_dict[k])), f"{k} is not finite"
    print("KERNEL_OK")
</pallas_src>

<mosaic_0001>
module attributes {stable_mosaic.version = 11 : i64} {
  func.func @_loss_kernel(%arg0: i32, %arg1: memref<8x256xf32, #tpu.memory_space<vmem>>, %arg2: memref<7x8x256xf32, #tpu.memory_space<vmem>>, %arg3: memref<12x8x256xf32, #tpu.memory_space<vmem>>, %arg4: memref<8x128xf32, #tpu.memory_space<vmem>>) attributes {dimension_semantics = [#tpu.dimension_semantics<parallel>], iteration_bounds = array<i64: 1>, scalar_prefetch = 0 : i64, scratch_operands = 0 : i64, tpu.core_type = #tpu.core_type<tc>, window_params = [{pipeline_mode = #tpu.pipeline_mode<synchronous>, transform_indices = @transform_0, window_bounds = array<i64: 8, 256>}, {transform_indices = @transform_1, window_bounds = array<i64: 7, 8, 256>}, {transform_indices = @transform_2, window_bounds = array<i64: 12, 8, 256>}, {transform_indices = @transform_3, window_bounds = array<i64: 8, 128>}]} {
    %c0 = arith.constant 0 : index
    %c0_0 = arith.constant 0 : index
    %c0_1 = arith.constant 0 : index
    %0 = vector.load %arg2[%c0, %c0_0, %c0_1] : memref<7x8x256xf32, #tpu.memory_space<vmem>>, vector<7x8x256xf32>
    %c0_2 = arith.constant 0 : index
    %c0_3 = arith.constant 0 : index
    %c0_4 = arith.constant 0 : index
    %1 = vector.load %arg3[%c0_2, %c0_3, %c0_4] : memref<12x8x256xf32, #tpu.memory_space<vmem>>, vector<12x8x256xf32>
    %c0_5 = arith.constant 0 : index
    %c0_6 = arith.constant 0 : index
    %2 = vector.load %arg1[%c0_5, %c0_6] : memref<8x256xf32, #tpu.memory_space<vmem>>, vector<1x256xf32>
    %c1 = arith.constant 1 : index
    %c0_7 = arith.constant 0 : index
    %3 = vector.load %arg1[%c1, %c0_7] : memref<8x256xf32, #tpu.memory_space<vmem>>, vector<1x256xf32>
    %c2 = arith.constant 2 : index
    %c0_8 = arith.constant 0 : index
    %4 = vector.load %arg1[%c2, %c0_8] : memref<8x256xf32, #tpu.memory_space<vmem>>, vector<1x256xf32>
    %cst = arith.constant 5.000000e-01 : f32
    %5 = vector.broadcast %cst : f32 to vector<1x256xf32>
    %6 = arith.cmpf ogt, %4, %5 : vector<1x256xf32>
    %7 = vector.extract_strided_slice %0 {offsets = [0, 0, 0], sizes = [3, 8, 256], strides = [1, 1, 1]} : vector<7x8x256xf32> to vector<3x8x256xf32>
    %8 = vector.extract_strided_slice %1 {offsets = [0, 0, 0], sizes = [3, 8, 256], strides = [1, 1, 1]} : vector<12x8x256xf32> to vector<3x8x256xf32>
    %cst_9 = arith.constant dense<0xFF800000> : vector<8x256xf32>
    %9 = vector.multi_reduction <maximumf>, %8, %cst_9 [0] : vector<3x8x256xf32> to vector<8x256xf32>
    %cst_10 = arith.constant 0.000000e+00 : f32
    %10 = vector.broadcast %cst_10 : f32 to vector<8x256xf32>
    %11 = arith.cmpf ogt, %9, %10 : vector<8x256xf32>
    %12 = arith.extui %11 : vector<8x256xi1> to vector<8x256xi32>
    %13 = arith.sitofp %12 : vector<8x256xi32> to vector<8x256xf32>
    %cst_11 = arith.constant dense<0.000000e+00> : vector<8xf32>
    %14 = vector.multi_reduction <add>, %13, %cst_11 [1] : vector<8x256xf32> to vector<8xf32>
    %15 = vector.shape_cast %14 : vector<8xf32> to vector<8x1xf32>
    %cst_12 = arith.constant 9.765625E-4 : f32
    %16 = vector.broadcast %cst_12 : f32 to vector<8x1xf32>
    %17 = arith.maximumf %15, %16 : vector<8x1xf32>
    %18 = arith.negf %7 : vector<3x8x256xf32>
    %19 = math.exp %18 : vector<3x8x256xf32>
    %cst_13 = arith.constant 1.000000e+00 : f32
    %20 = vector.broadcast %cst_13 : f32 to vector<3x8x256xf32>
    %21 = arith.addf %20, %19 : vector<3x8x256xf32>
    %22 = arith.divf %20, %21 : vector<3x8x256xf32>
    %23 = math.absf %7 : vector<3x8x256xf32>
    %cst_14 = arith.constant 0.000000e+00 : f32
    %24 = vector.broadcast %cst_14 : f32 to vector<3x8x256xf32>
    %25 = arith.subf %24, %23 : vector<3x8x256xf32>
    %26 = math.exp %25 : vector<3x8x256xf32>
    %cst_15 = arith.constant 1.000000e+00 : f32
    %27 = vector.broadcast %cst_15 : f32 to vector<3x8x256xf32>
    %28 = arith.addf %27, %26 : vector<3x8x256xf32>
    %29 = math.log %28 : vector<3x8x256xf32>
    %cst_16 = arith.constant 0.000000e+00 : f32
    %30 = vector.broadcast %cst_16 : f32 to vector<3x8x256xf32>
    %31 = arith.minimumf %7, %30 : vector<3x8x256xf32>
    %32 = arith.subf %31, %29 : vector<3x8x256xf32>
    %cst_17 = arith.constant 0.000000e+00 : f32
    %33 = vector.broadcast %cst_17 : f32 to vector<3x8x256xf32>
    %34 = arith.maximumf %7, %33 : vector<3x8x256xf32>
    %cst_18 = arith.constant 0.000000e+00 : f32
    %35 = vector.broadcast %cst_18 : f32 to vector<3x8x256xf32>
    %36 = arith.subf %35, %34 : vector<3x8x256xf32>
    %37 = arith.subf %36, %29 : vector<3x8x256xf32>
    %cst_19 = arith.constant 1.000000e+00 : f32
    %38 = vector.broadcast %cst_19 : f32 to vector<3x8x256xf32>
    %39 = arith.subf %38, %22 : vector<3x8x256xf32>
    %40 = arith.mulf %39, %39 : vector<3x8x256xf32>
    %cst_20 = arith.constant -7.500000e-01 : f32
    %41 = vector.broadcast %cst_20 : f32 to vector<3x8x256xf32>
    %42 = arith.mulf %41, %40 : vector<3x8x256xf32>
    %43 = arith.mulf %42, %32 : vector<3x8x256xf32>
    %44 = arith.mulf %43, %8 : vector<3x8x256xf32>
    %45 = vector.shape_cast %13 : vector<8x256xf32> to vector<1x8x256xf32>
    %46 = vector.broadcast %45 : vector<1x8x256xf32> to vector<3x8x256xf32>
    %47 = arith.mulf %44, %46 : vector<3x8x256xf32>
    %48 = arith.mulf %22, %22 : vector<3x8x256xf32>
    %cst_21 = arith.constant -2.500000e-01 : f32
    %49 = vector.broadcast %cst_21 : f32 to vector<3x8x256xf32>
    %50 = arith.mulf %49, %48 : vector<3x8x256xf32>
    %51 = arith.mulf %50, %37 : vector<3x8x256xf32>
    %cst_22 = arith.constant 1.000000e+00 : f32
    %52 = vector.broadcast %cst_22 : f32 to vector<3x8x256xf32>
    %53 = arith.subf %52, %8 : vector<3x8x256xf32>
    %54 = arith.mulf %51, %53 : vector<3x8x256xf32>
    %cst_23 = arith.constant 1.000000e+00 : f32
    %55 = vector.broadcast %cst_23 : f32 to vector<8x256xf32>
    %56 = arith.subf %55, %13 : vector<8x256xf32>
    %57 = vector.broadcast %4 : vector<1x256xf32> to vector<8x256xf32>
    %58 = arith.mulf %56, %57 : vector<8x256xf32>
    %59 = vector.shape_cast %58 : vector<8x256xf32> to vector<1x8x256xf32>
    %60 = vector.broadcast %59 : vector<1x8x256xf32> to vector<3x8x256xf32>
    %61 = arith.mulf %54, %60 : vector<3x8x256xf32>
    %cst_24 = arith.constant dense<0.000000e+00> : vector<8x256xf32>
    %62 = vector.multi_reduction <add>, %47, %cst_24 [0] : vector<3x8x256xf32> to vector<8x256xf32>
    %cst_25 = arith.constant dense<0.000000e+00> : vector<8xf32>
    %63 = vector.multi_reduction <add>, %62, %cst_25 [1] : vector<8x256xf32> to vector<8xf32>
    %64 = vector.shape_cast %63 : vector<8xf32> to vector<8x1xf32>
    %cst_26 = arith.constant dense<0.000000e+00> : vector<8x256xf32>
    %65 = vector.multi_reduction <add>, %61, %cst_26 [0] : vector<3x8x256xf32> to vector<8x256xf32>
    %cst_27 = arith.constant dense<0.000000e+00> : vector<8xf32>
    %66 = vector.multi_reduction <add>, %65, %cst_27 [1] : vector<8x256xf32> to vector<8xf32>
    %67 = vector.shape_cast %66 : vector<8xf32> to vector<8x1xf32>
    %68 = vector.extract_strided_slice %0 {offsets = [3, 0, 0], sizes = [1, 8, 256], strides = [1, 1, 1]} : vector<7x8x256xf32> to vector<1x8x256xf32>
    %69 = vector.shape_cast %68 : vector<1x8x256xf32> to vector<8x256xf32>
    %70 = arith.negf %69 : vector<8x256xf32>
    %71 = math.exp %70 : vector<8x256xf32>
    %cst_28 = arith.constant 1.000000e+00 : f32
    %72 = vector.broadcast %cst_28 : f32 to vector<8x256xf32>
    %73 = arith.addf %72, %71 : vector<8x256xf32>
    %74 = arith.divf %72, %73 : vector<8x256xf32>
    %75 = vector.broadcast %2 : vector<1x256xf32> to vector<8x256xf32>
    %76 = arith.addf %74, %75 : vector<8x256xf32>
    %cst_29 = arith.constant 0.0769230798 : f32
    %77 = vector.broadcast %cst_29 : f32 to vector<8x256xf32>
    %78 = arith.mulf %76, %77 : vector<8x256xf32>
    %79 = vector.extract_strided_slice %0 {offsets = [4, 0, 0], sizes = [1, 8, 256], strides = [1, 1, 1]} : vector<7x8x256xf32> to vector<1x8x256xf32>
    %80 = vector.shape_cast %79 : vector<1x8x256xf32> to vector<8x256xf32>
    %81 = arith.negf %80 : vector<8x256xf32>
    %82 = math.exp %81 : vector<8x256xf32>
    %cst_30 = arith.constant 1.000000e+00 : f32
    %83 = vector.broadcast %cst_30 : f32 to vector<8x256xf32>
    %84 = arith.addf %83, %82 : vector<8x256xf32>
    %85 = arith.divf %83, %84 : vector<8x256xf32>
    %86 = vector.broadcast %3 : vector<1x256xf32> to vector<8x256xf32>
    %87 = arith.addf %85, %86 : vector<8x256xf32>
    %cst_31 = arith.constant 0.0769230798 : f32
    %88 = vector.broadcast %cst_31 : f32 to vector<8x256xf32>
    %89 = arith.mulf %87, %88 : vector<8x256xf32>
    %90 = vector.extract_strided_slice %0 {offsets = [5, 0, 0], sizes = [1, 8, 256], strides = [1, 1, 1]} : vector<7x8x256xf32> to vector<1x8x256xf32>
    %91 = vector.shape_cast %90 : vector<1x8x256xf32> to vector<8x256xf32>
    %92 = math.exp %91 : vector<8x256xf32>
    %cst_32 = arith.constant 0.0769230798 : f32
    %93 = vector.broadcast %cst_32 : f32 to vector<8x256xf32>
    %94 = arith.mulf %92, %93 : vector<8x256xf32>
    %95 = vector.extract_strided_slice %0 {offsets = [6, 0, 0], sizes = [1, 8, 256], strides = [1, 1, 1]} : vector<7x8x256xf32> to vector<1x8x256xf32>
    %96 = vector.shape_cast %95 : vector<1x8x256xf32> to vector<8x256xf32>
    %97 = math.exp %96 : vector<8x256xf32>
    %cst_33 = arith.constant 0.0769230798 : f32
    %98 = vector.broadcast %cst_33 : f32 to vector<8x256xf32>
    %99 = arith.mulf %97, %98 : vector<8x256xf32>
    %cst_34 = arith.constant 5.000000e-01 : f32
    %100 = vector.broadcast %cst_34 : f32 to vector<8x256xf32>
    %101 = arith.mulf %94, %100 : vector<8x256xf32>
    %cst_35 = arith.constant 5.000000e-01 : f32
    %102 = vector.broadcast %cst_35 : f32 to vector<8x256xf32>
    %103 = arith.mulf %99, %102 : vector<8x256xf32>
    %104 = arith.subf %78, %101 : vector<8x256xf32>
    %105 = arith.subf %89, %103 : vector<8x256xf32>
    %106 = arith.addf %78, %101 : vector<8x256xf32>
    %107 = arith.addf %89, %103 : vector<8x256xf32>
    %108 = vector.extract_strided_slice %1 {offsets = [8, 0, 0], sizes = [1, 8, 256], strides = [1, 1, 1]} : vector<12x8x256xf32> to vector<1x8x256xf32>
    %109 = vector.shape_cast %108 : vector<1x8x256xf32> to vector<8x256xf32>
    %110 = vector.extract_strided_slice %1 {offsets = [9, 0, 0], sizes = [1, 8, 256], strides = [1, 1, 1]} : vector<12x8x256xf32> to vector<1x8x256xf32>
    %111 = vector.shape_cast %110 : vector<1x8x256xf32> to vector<8x256xf32>
    %112 = vector.extract_strided_slice %1 {offsets = [10, 0, 0], sizes = [1, 8, 256], strides = [1, 1, 1]} : vector<12x8x256xf32> to vector<1x8x256xf32>
    %113 = vector.shape_cast %112 : vector<1x8x256xf32> to vector<8x256xf32>
    %114 = vector.extract_strided_slice %1 {offsets = [11, 0, 0], sizes = [1, 8, 256], strides = [1, 1, 1]} : vector<12x8x256xf32> to vector<1x8x256xf32>
    %115 = vector.shape_cast %114 : vector<1x8x256xf32> to vector<8x256xf32>
    %116 = arith.minimumf %106, %113 : vector<8x256xf32>
    %117 = arith.maximumf %104, %109 : vector<8x256xf32>
    %118 = arith.subf %116, %117 : vector<8x256xf32>
    %cst_36 = arith.constant 0.000000e+00 : f32
    %119 = vector.broadcast %cst_36 : f32 to vector<8x256xf32>
    %120 = arith.maximumf %118, %119 : vector<8x256xf32>
    %121 = arith.minimumf %107, %115 : vector<8x256xf32>
    %122 = arith.maximumf %105, %111 : vector<8x256xf32>
    %123 = arith.subf %121, %122 : vector<8x256xf32>
    %cst_37 = arith.constant 0.000000e+00 : f32
    %124 = vector.broadcast %cst_37 : f32 to vector<8x256xf32>
    %125 = arith.maximumf %123, %124 : vector<8x256xf32>
    %126 = arith.mulf %120, %125 : vector<8x256xf32>
    %127 = arith.subf %113, %109 : vector<8x256xf32>
    %128 = arith.subf %115, %111 : vector<8x256xf32>
    %129 = arith.mulf %94, %99 : vector<8x256xf32>
    %130 = arith.mulf %127, %128 : vector<8x256xf32>
    %131 = arith.addf %129, %130 : vector<8x256xf32>
    %132 = arith.subf %131, %126 : vector<8x256xf32>
    %cst_38 = arith.constant 1.000000e-07 : f32
    %133 = vector.broadcast %cst_38 : f32 to vector<8x256xf32>
    %134 = arith.addf %132, %133 : vector<8x256xf32>
    %135 = arith.divf %126, %134 : vector<8x256xf32>
    %136 = arith.maximumf %106, %113 : vector<8x256xf32>
    %137 = arith.minimumf %104, %109 : vector<8x256xf32>
    %138 = arith.subf %136, %137 : vector<8x256xf32>
    %139 = arith.maximumf %107, %115 : vector<8x256xf32>
    %140 = arith.minimumf %105, %111 : vector<8x256xf32>
    %141 = arith.subf %139, %140 : vector<8x256xf32>
    %142 = arith.mulf %138, %138 : vector<8x256xf32>
    %143 = arith.mulf %141, %141 : vector<8x256xf32>
    %144 = arith.addf %142, %143 : vector<8x256xf32>
    %cst_39 = arith.constant 1.000000e-07 : f32
    %145 = vector.broadcast %cst_39 : f32 to vector<8x256xf32>
    %146 = arith.addf %144, %145 : vector<8x256xf32>
    %147 = arith.addf %109, %113 : vector<8x256xf32>
    %cst_40 = arith.constant 5.000000e-01 : f32
    %148 = vector.broadcast %cst_40 : f32 to vector<8x256xf32>
    %149 = arith.mulf %147, %148 : vector<8x256xf32>
    %150 = arith.addf %111, %115 : vector<8x256xf32>
    %cst_41 = arith.constant 5.000000e-01 : f32
    %151 = vector.broadcast %cst_41 : f32 to vector<8x256xf32>
    %152 = arith.mulf %150, %151 : vector<8x256xf32>
    %153 = arith.subf %149, %78 : vector<8x256xf32>
    %154 = arith.mulf %153, %153 : vector<8x256xf32>
    %155 = arith.subf %152, %89 : vector<8x256xf32>
    %156 = arith.mulf %155, %155 : vector<8x256xf32>
    %157 = arith.addf %154, %156 : vector<8x256xf32>
    %cst_42 = arith.constant 9.99999971E-10 : f32
    %158 = vector.broadcast %cst_42 : f32 to vector<8x256xf32>
    %159 = arith.maximumf %128, %158 : vector<8x256xf32>
    %160 = arith.divf %127, %159 : vector<8x256xf32>
    %cst_43 = arith.constant 0.000000e+00 : f32
    %161 = vector.broadcast %cst_43 : f32 to vector<8x256xf32>
    %162 = arith.cmpf olt, %160, %161 : vector<8x256xf32>
    %cst_44 = arith.constant -1.000000e+00 : f32
    %cst_45 = arith.constant 1.000000e+00 : f32
    %163 = vector.broadcast %cst_44 : f32 to vector<8x256xf32>
    %164 = vector.broadcast %cst_45 : f32 to vector<8x256xf32>
    %165 = arith.select %162, %163, %164 : vector<8x256xi1>, vector<8x256xf32>
    %166 = math.absf %160 : vector<8x256xf32>
    %cst_46 = arith.constant 2.41421366 : f32
    %167 = vector.broadcast %cst_46 : f32 to vector<8x256xf32>
    %168 = arith.cmpf ogt, %166, %167 : vector<8x256xf32>
    %cst_47 = arith.constant 0.414213568 : f32
    %169 = vector.broadcast %cst_47 : f32 to vector<8x256xf32>
    %170 = arith.cmpf ogt, %166, %169 : vector<8x256xf32>
    %cst_48 = arith.constant 0.785398185 : f32
    %cst_49 = arith.constant 0.000000e+00 : f32
    %171 = vector.broadcast %cst_48 : f32 to vector<8x256xf32>
    %172 = vector.broadcast %cst_49 : f32 to vector<8x256xf32>
    %173 = arith.select %170, %171, %172 : vector<8x256xi1>, vector<8x256xf32>
    %cst_50 = arith.constant 1.57079637 : f32
    %174 = vector.broadcast %cst_50 : f32 to vector<8x256xf32>
    %175 = arith.select %168, %174, %173 : vector<8x256xi1>, vector<8x256xf32>
    %cst_51 = arith.constant 1.000000e-30 : f32
    %176 = vector.broadcast %cst_51 : f32 to vector<8x256xf32>
    %177 = arith.maximumf %166, %176 : vector<8x256xf32>
    %cst_52 = arith.constant -1.000000e+00 : f32
    %178 = vector.broadcast %cst_52 : f32 to vector<8x256xf32>
    %179 = arith.divf %178, %177 : vector<8x256xf32>
    %cst_53 = arith.constant 1.000000e+00 : f32
    %180 = vector.broadcast %cst_53 : f32 to vector<8x256xf32>
    %181 = arith.subf %166, %180 : vector<8x256xf32>
    %cst_54 = arith.constant 1.000000e+00 : f32
    %182 = vector.broadcast %cst_54 : f32 to vector<8x256xf32>
    %183 = arith.addf %166, %182 : vector<8x256xf32>
    %184 = arith.divf %181, %183 : vector<8x256xf32>
    %185 = arith.select %170, %184, %166 : vector<8x256xi1>, vector<8x256xf32>
    %186 = arith.select %168, %179, %185 : vector<8x256xi1>, vector<8x256xf32>
    %187 = arith.mulf %186, %186 : vector<8x256xf32>
    %cst_55 = arith.constant 0.0805374458 : f32
    %188 = vector.broadcast %cst_55 : f32 to vector<8x256xf32>
    %189 = arith.mulf %188, %187 : vector<8x256xf32>
    %cst_56 = arith.constant 0.138776854 : f32
    %190 = vector.broadcast %cst_56 : f32 to vector<8x256xf32>
    %191 = arith.subf %189, %190 : vector<8x256xf32>
    %192 = arith.mulf %191, %187 : vector<8x256xf32>
    %cst_57 = arith.constant 0.199777111 : f32
    %193 = vector.broadcast %cst_57 : f32 to vector<8x256xf32>
    %194 = arith.addf %192, %193 : vector<8x256xf32>
    %195 = arith.mulf %194, %187 : vector<8x256xf32>
    %cst_58 = arith.constant 0.333329499 : f32
    %196 = vector.broadcast %cst_58 : f32 to vector<8x256xf32>
    %197 = arith.subf %195, %196 : vector<8x256xf32>
    %198 = arith.mulf %197, %187 : vector<8x256xf32>
    %199 = arith.mulf %198, %186 : vector<8x256xf32>
    %200 = arith.addf %175, %199 : vector<8x256xf32>
    %201 = arith.addf %200, %186 : vector<8x256xf32>
    %202 = arith.mulf %165, %201 : vector<8x256xf32>
    %cst_59 = arith.constant 9.99999971E-10 : f32
    %203 = vector.broadcast %cst_59 : f32 to vector<8x256xf32>
    %204 = arith.maximumf %99, %203 : vector<8x256xf32>
    %205 = arith.divf %94, %204 : vector<8x256xf32>
    %cst_60 = arith.constant 0.000000e+00 : f32
    %206 = vector.broadcast %cst_60 : f32 to vector<8x256xf32>
    %207 = arith.cmpf olt, %205, %206 : vector<8x256xf32>
    %cst_61 = arith.constant -1.000000e+00 : f32
    %cst_62 = arith.constant 1.000000e+00 : f32
    %208 = vector.broadcast %cst_61 : f32 to vector<8x256xf32>
    %209 = vector.broadcast %cst_62 : f32 to vector<8x256xf32>
    %210 = arith.select %207, %208, %209 : vector<8x256xi1>, vector<8x256xf32>
    %211 = math.absf %205 : vector<8x256xf32>
    %cst_63 = arith.constant 2.41421366 : f32
    %212 = vector.broadcast %cst_63 : f32 to vector<8x256xf32>
    %213 = arith.cmpf ogt, %211, %212 : vector<8x256xf32>
    %cst_64 = arith.constant 0.414213568 : f32
    %214 = vector.broadcast %cst_64 : f32 to vector<8x256xf32>
    %215 = arith.cmpf ogt, %211, %214 : vector<8x256xf32>
    %cst_65 = arith.constant 0.785398185 : f32
    %cst_66 = arith.constant 0.000000e+00 : f32
    %216 = vector.broadcast %cst_65 : f32 to vector<8x256xf32>
    %217 = vector.broadcast %cst_66 : f32 to vector<8x256xf32>
    %218 = arith.select %215, %216, %217 : vector<8x256xi1>, vector<8x256xf32>
    %cst_67 = arith.constant 1.57079637 : f32
    %219 = vector.broadcast %cst_67 : f32 to vector<8x256xf32>
    %220 = arith.select %213, %219, %218 : vector<8x256xi1>, vector<8x256xf32>
    %cst_68 = arith.constant 1.000000e-30 : f32
    %221 = vector.broadcast %cst_68 : f32 to vector<8x256xf32>
    %222 = arith.maximumf %211, %221 : vector<8x256xf32>
    %cst_69 = arith.constant -1.000000e+00 : f32
    %223 = vector.broadcast %cst_69 : f32 to vector<8x256xf32>
    %224 = arith.divf %223, %222 : vector<8x256xf32>
    %cst_70 = arith.constant 1.000000e+00 : f32
    %225 = vector.broadcast %cst_70 : f32 to vector<8x256xf32>
    %226 = arith.subf %211, %225 : vector<8x256xf32>
    %cst_71 = arith.constant 1.000000e+00 : f32
    %227 = vector.broadcast %cst_71 : f32 to vector<8x256xf32>
    %228 = arith.addf %211, %227 : vector<8x256xf32>
    %229 = arith.divf %226, %228 : vector<8x256xf32>
    %230 = arith.select %215, %229, %211 : vector<8x256xi1>, vector<8x256xf32>
    %231 = arith.select %213, %224, %230 : vector<8x256xi1>, vector<8x256xf32>
    %232 = arith.mulf %231, %231 : vector<8x256xf32>
    %cst_72 = arith.constant 0.0805374458 : f32
    %233 = vector.broadcast %cst_72 : f32 to vector<8x256xf32>
    %234 = arith.mulf %233, %232 : vector<8x256xf32>
    %cst_73 = arith.constant 0.138776854 : f32
    %235 = vector.broadcast %cst_73 : f32 to vector<8x256xf32>
    %236 = arith.subf %234, %235 : vector<8x256xf32>
    %237 = arith.mulf %236, %232 : vector<8x256xf32>
    %cst_74 = arith.constant 0.199777111 : f32
    %238 = vector.broadcast %cst_74 : f32 to vector<8x256xf32>
    %239 = arith.addf %237, %238 : vector<8x256xf32>
    %240 = arith.mulf %239, %232 : vector<8x256xf32>
    %cst_75 = arith.constant 0.333329499 : f32
    %241 = vector.broadcast %cst_75 : f32 to vector<8x256xf32>
    %242 = arith.subf %240, %241 : vector<8x256xf32>
    %243 = arith.mulf %242, %232 : vector<8x256xf32>
    %244 = arith.mulf %243, %231 : vector<8x256xf32>
    %245 = arith.addf %220, %244 : vector<8x256xf32>
    %246 = arith.addf %245, %231 : vector<8x256xf32>
    %247 = arith.mulf %210, %246 : vector<8x256xf32>
    %248 = arith.subf %202, %247 : vector<8x256xf32>
    %249 = arith.mulf %248, %248 : vector<8x256xf32>
    %cst_76 = arith.constant 0.405284733 : f32
    %250 = vector.broadcast %cst_76 : f32 to vector<8x256xf32>
    %251 = arith.mulf %250, %249 : vector<8x256xf32>
    %252 = arith.subf %251, %135 : vector<8x256xf32>
    %cst_77 = arith.constant 1.00000012 : f32
    %253 = vector.broadcast %cst_77 : f32 to vector<8x256xf32>
    %254 = arith.addf %252, %253 : vector<8x256xf32>
    %255 = arith.divf %251, %254 : vector<8x256xf32>
    %256 = arith.divf %157, %146 : vector<8x256xf32>
    %257 = arith.mulf %251, %255 : vector<8x256xf32>
    %258 = arith.addf %256, %257 : vector<8x256xf32>
    %259 = arith.subf %135, %258 : vector<8x256xf32>
    %cst_78 = arith.constant 1.000000e+00 : f32
    %260 = vector.broadcast %cst_78 : f32 to vector<8x256xf32>
    %261 = arith.subf %260, %259 : vector<8x256xf32>
    %262 = arith.mulf %261, %13 : vector<8x256xf32>
    %cst_79 = arith.constant dense<0.000000e+00> : vector<8xf32>
    %263 = vector.multi_reduction <add>, %262, %cst_79 [1] : vector<8x256xf32> to vector<8xf32>
    %264 = vector.shape_cast %263 : vector<8xf32> to vector<8x1xf32>
    %cst_80 = arith.constant dense<0xFF800000> : vector<8x256xf32>
    %265 = vector.multi_reduction <maximumf>, %22, %cst_80 [0] : vector<3x8x256xf32> to vector<8x256xf32>
    %cst_81 = arith.constant dense<0x7F800000> : vector<8x256xf32>
    %266 = vector.multi_reduction <minimumf>, %22, %cst_81 [0] : vector<3x8x256xf32> to vector<8x256xf32>
    %cst_82 = arith.constant dense<0.000000e+00> : vector<8x256xf32>
    %267 = vector.multi_reduction <add>, %22, %cst_82 [0] : vector<3x8x256xf32> to vector<8x256xf32>
    %cst_83 = arith.constant -1.000000e+00 : f32
    %268 = vector.shape_cast %6 : vector<1x256xi1> to vector<1x256xi1>
    %269 = vector.broadcast %268 : vector<1x256xi1> to vector<8x256xi1>
    %270 = vector.broadcast %cst_83 : f32 to vector<8x256xf32>
    %271 = arith.select %269, %265, %270 : vector<8x256xi1>, vector<8x256xf32>
    %cst_84 = arith.constant dense<0xFF800000> : vector<8xf32>
    %272 = vector.multi_reduction <maximumf>, %271, %cst_84 [1] : vector<8x256xf32> to vector<8xf32>
    %273 = vector.shape_cast %272 : vector<8xf32> to vector<8x1xf32>
    %cst_85 = arith.constant 2.000000e+00 : f32
    %274 = vector.shape_cast %6 : vector<1x256xi1> to vector<1x256xi1>
    %275 = vector.broadcast %274 : vector<1x256xi1> to vector<8x256xi1>
    %276 = vector.broadcast %cst_85 : f32 to vector<8x256xf32>
    %277 = arith.select %275, %266, %276 : vector<8x256xi1>, vector<8x256xf32>
    %cst_86 = arith.constant dense<0x7F800000> : vector<8xf32>
    %278 = vector.multi_reduction <minimumf>, %277, %cst_86 [1] : vector<8x256xf32> to vector<8xf32>
    %279 = vector.shape_cast %278 : vector<8xf32> to vector<8x1xf32>
    %280 = vector.broadcast %4 : vector<1x256xf32> to vector<8x256xf32>
    %281 = arith.mulf %267, %280 : vector<8x256xf32>
    %cst_87 = arith.constant dense<0.000000e+00> : vector<8xf32>
    %282 = vector.multi_reduction <add>, %281, %cst_87 [1] : vector<8x256xf32> to vector<8xf32>
    %283 = vector.shape_cast %282 : vector<8xf32> to vector<8x1xf32>
    %284 = tpu.iota {dimensions = array<i32: 1>} : vector<1x128xi32>
    %cst_88 = arith.constant 0.000000e+00 : f32
    %285 = vector.broadcast %cst_88 : f32 to vector<8x128xf32>
    %c0_i32 = arith.constant 0 : i32
    %286 = vector.broadcast %c0_i32 : i32 to vector<1x128xi32>
    %287 = arith.cmpi eq, %284, %286 : vector<1x128xi32>
    %288 = vector.shape_cast %287 : vector<1x128xi1> to vector<1x128xi1>
    %289 = vector.broadcast %288 : vector<1x128xi1> to vector<8x128xi1>
    %290 = vector.shape_cast %64 : vector<8x1xf32> to vector<8x1xf32>
    %291 = vector.broadcast %290 : vector<8x1xf32> to vector<8x128xf32>
    %292 = arith.select %289, %291, %285 : vector<8x128xi1>, vector<8x128xf32>
    %c1_i32 = arith.constant 1 : i32
    %293 = vector.broadcast %c1_i32 : i32 to vector<1x128xi32>
    %294 = arith.cmpi eq, %284, %293 : vector<1x128xi32>
    %295 = vector.shape_cast %294 : vector<1x128xi1> to vector<1x128xi1>
    %296 = vector.broadcast %295 : vector<1x128xi1> to vector<8x128xi1>
    %297 = vector.shape_cast %67 : vector<8x1xf32> to vector<8x1xf32>
    %298 = vector.broadcast %297 : vector<8x1xf32> to vector<8x128xf32>
    %299 = arith.select %296, %298, %292 : vector<8x128xi1>, vector<8x128xf32>
    %c2_i32 = arith.constant 2 : i32
    %300 = vector.broadcast %c2_i32 : i32 to vector<1x128xi32>
    %301 = arith.cmpi eq, %284, %300 : vector<1x128xi32>
    %302 = vector.shape_cast %301 : vector<1x128xi1> to vector<1x128xi1>
    %303 = vector.broadcast %302 : vector<1x128xi1> to vector<8x128xi1>
    %304 = vector.shape_cast %17 : vector<8x1xf32> to vector<8x1xf32>
    %305 = vector.broadcast %304 : vector<8x1xf32> to vector<8x128xf32>
    %306 = arith.select %303, %305, %299 : vector<8x128xi1>, vector<8x128xf32>
    %c3_i32 = arith.constant 3 : i32
    %307 = vector.broadcast %c3_i32 : i32 to vector<1x128xi32>
    %308 = arith.cmpi eq, %284, %307 : vector<1x128xi32>
    %309 = vector.shape_cast %308 : vector<1x128xi1> to vector<1x128xi1>
    %310 = vector.broadcast %309 : vector<1x128xi1> to vector<8x128xi1>
    %311 = vector.shape_cast %264 : vector<8x1xf32> to vector<8x1xf32>
    %312 = vector.broadcast %311 : vector<8x1xf32> to vector<8x128xf32>
    %313 = arith.select %310, %312, %306 : vector<8x128xi1>, vector<8x128xf32>
    %c4_i32 = arith.constant 4 : i32
    %314 = vector.broadcast %c4_i32 : i32 to vector<1x128xi32>
    %315 = arith.cmpi eq, %284, %314 : vector<1x128xi32>
    %316 = vector.shape_cast %315 : vector<1x128xi1> to vector<1x128xi1>
    %317 = vector.broadcast %316 : vector<1x128xi1> to vector<8x128xi1>
    %318 = vector.shape_cast %15 : vector<8x1xf32> to vector<8x1xf32>
    %319 = vector.broadcast %318 : vector<8x1xf32> to vector<8x128xf32>
    %320 = arith.select %317, %319, %313 : vector<8x128xi1>, vector<8x128xf32>
    %c5_i32 = arith.constant 5 : i32
    %321 = vector.broadcast %c5_i32 : i32 to vector<1x128xi32>
    %322 = arith.cmpi eq, %284, %321 : vector<1x128xi32>
    %323 = vector.shape_cast %322 : vector<1x128xi1> to vector<1x128xi1>
    %324 = vector.broadcast %323 : vector<1x128xi1> to vector<8x128xi1>
    %325 = vector.shape_cast %273 : vector<8x1xf32> to vector<8x1xf32>
    %326 = vector.broadcast %325 : vector<8x1xf32> to vector<8x128xf32>
    %327 = arith.select %324, %326, %320 : vector<8x128xi1>, vector<8x128xf32>
    %c6_i32 = arith.constant 6 : i32
    %328 = vector.broadcast %c6_i32 : i32 to vector<1x128xi32>
    %329 = arith.cmpi eq, %284, %328 : vector<1x128xi32>
    %330 = vector.shape_cast %329 : vector<1x128xi1> to vector<1x128xi1>
    %331 = vector.broadcast %330 : vector<1x128xi1> to vector<8x128xi1>
    %332 = vector.shape_cast %279 : vector<8x1xf32> to vector<8x1xf32>
    %333 = vector.broadcast %332 : vector<8x1xf32> to vector<8x128xf32>
    %334 = arith.select %331, %333, %327 : vector<8x128xi1>, vector<8x128xf32>
    %c7_i32 = arith.constant 7 : i32
    %335 = vector.broadcast %c7_i32 : i32 to vector<1x128xi32>
    %336 = arith.cmpi eq, %284, %335 : vector<1x128xi32>
    %337 = vector.shape_cast %336 : vector<1x128xi1> to vector<1x128xi1>
    %338 = vector.broadcast %337 : vector<1x128xi1> to vector<8x128xi1>
    %339 = vector.shape_cast %283 : vector<8x1xf32> to vector<8x1xf32>
    %340 = vector.broadcast %339 : vector<8x1xf32> to vector<8x128xf32>
    %341 = arith.select %338, %340, %334 : vector<8x128xi1>, vector<8x128xf32>
    %c0_89 = arith.constant 0 : index
    %c0_90 = arith.constant 0 : index
    %342 = vector.load %arg4[%c0_89, %c0_90] : memref<8x128xf32, #tpu.memory_space<vmem>>, vector<8x128xf32>
    tpu.vector_store %arg4[%c0_89, %c0_90], %341 {strides = array<i32>} : memref<8x128xf32, #tpu.memory_space<vmem>>, vector<8x128xf32>,
    return
  }
  func.func @transform_0(%arg0: i32) -> (i32, i32) {
    %c0_i32 = arith.constant 0 : i32
    %c0_i32_0 = arith.constant 0 : i32
    %c0_i32_1 = arith.constant 0 : i32
    return %c0_i32, %c0_i32_0 : i32, i32
  }
  func.func @transform_1(%arg0: i32) -> (i32, i32, i32) {
    %c0_i32 = arith.constant 0 : i32
    %c0_i32_0 = arith.constant 0 : i32
    %c0_i32_1 = arith.constant 0 : i32
    return %c0_i32, %arg0, %c0_i32_0 : i32, i32, i32
  }
  func.func @transform_2(%arg0: i32) -> (i32, i32, i32) {
    %c0_i32 = arith.constant 0 : i32
    %c0_i32_0 = arith.constant 0 : i32
    %c0_i32_1 = arith.constant 0 : i32
    return %c0_i32, %arg0, %c0_i32_0 : i32, i32, i32
  }
  func.func @transform_3(%arg0: i32) -> (i32, i32) {
    %c0_i32 = arith.constant 0 : i32
    %c0_i32_0 = arith.constant 0 : i32
    return %arg0, %c0_i32 : i32, i32
  }
}

</mosaic_0001>

<llo_original>
// kernel: tpu_custom_call.1
$region0: #{tpu_custom_call.1}
  #allocation0 [shape = 'u32[]', space=smem, size = 0x4, offset = 0x4, fixed_abs, tag = 'smem constant byte address 0x4 - core index']
  #allocation1 [shape = 'u32[144,128]{1,0:T(1,128)}', space=vmem, size = 0x12000, scoped, tag = 'internal scratch']
  %s0 = inlined_call_operand.hbm [shape: f32[8,256], index: 0, kind: input, shape index: {}]
  %s1 = inlined_call_operand.hbm [shape: f32[7,8,256], index: 1, kind: input, shape index: {}]
  %s2 = inlined_call_operand.hbm [shape: f32[12,8,256], index: 2, kind: input, shape index: {}]
  %s3 = inlined_call_operand.hbm [shape: f32[8,128], index: 3, kind: output, shape index: {}]
  %s4 = sld [smem:[#allocation0]]
  $region34: #{tpu_custom_call.1} parent=0
    _
  %s6 = ssub.s32 1, %s4
  %s7 = scalar_select 0, %s6, %s4
  $region1: #{tpu_custom_call.1} parent=0
    #allocation2 [shape = 'u8[8192]{0}', space=vmem, size = 0x2000, scoped, tag = 'input window, operand 0, single buffered']
    #allocation3 [shape = 's32[1]{0}', space=sflag, size = 0x4, scoped, tag = 'scoped memory for tpu_custom_call.1']
    #allocation4 [shape = 's32[1]{0}', space=sflag, size = 0x4, scoped, tag = 'scoped memory for tpu_custom_call.1']
    #allocation5 [shape = 'u8[57344]{0}', space=vmem, size = 0xe000, scoped, tag = 'input window, operand 1, single buffered']
    #allocation6 [shape = 's32[1]{0}', space=sflag, size = 0x4, scoped, tag = 'scoped memory for tpu_custom_call.1']
    #allocation7 [shape = 'u8[98304]{0}', space=vmem, size = 0x18000, scoped, tag = 'input window, operand 2, single buffered']
    #allocation8 [shape = 'u8[4096]{0}', space=vmem, size = 0x1000, scoped, tag = 'output window, operand 0, single buffered']
    %8 = vsyncpa [#allocation3], 0
    %9 = vsyncpa [#allocation6], 0
    %10 = vsyncpa [#allocation4], 0
    // Predicated region
    $region2: #{tpu_custom_call.1} parent=1 // pred_check
      _
    $region3: #{tpu_custom_call.1} parent=1 // pred_check_branch
      %12 = sbr.rel (0) target = $region5
    $region4: #{tpu_custom_call.1} parent=1 // pred_region
      %s14 = ssub.s32 256, 256
      %15 = vsyncadd [#allocation3], %s14
      %s17 = sshll.u32 [#allocation2], 4
      %s18 = int_to_ptr.vmem [resolvable:$true] %s17
      %20 = dma.hbm_to_vmem [thread:$0]  %s0, 256, %s18, [#allocation3]
    $region5: #{tpu_custom_call.1} parent=1 // pred_fallthru
      _
    // Predicated region
    $region6: #{tpu_custom_call.1} parent=1 // pred_check
      _
    $region7: #{tpu_custom_call.1} parent=1 // pred_check_branch
      %22 = sbr.rel (0) target = $region9
    $region8: #{tpu_custom_call.1} parent=1 // pred_region
      %s24 = ssub.s32 1792, 1792
      %25 = vsyncadd [#allocation6], %s24
      %s26 = sshll.u32 [#allocation5], 4
      %s27 = int_to_ptr.vmem [resolvable:$true] %s26
      %32 = dma.hbm_to_vmem [thread:$0]  %s1, 1792, %s27, [#allocation6], 256, 256, 16
    $region9: #{tpu_custom_call.1} parent=1 // pred_fallthru
      _
    // Predicated region
    $region10: #{tpu_custom_call.1} parent=1 // pred_check
      _
    $region11: #{tpu_custom_call.1} parent=1 // pred_check_branch
      %34 = sbr.rel (0) target = $region13
    $region12: #{tpu_custom_call.1} parent=1 // pred_region
      %s36 = ssub.s32 3072, 3072
      %37 = vsyncadd [#allocation6], %s36
      %s38 = sshll.u32 [#allocation7], 4
      %s39 = int_to_ptr.vmem [resolvable:$true] %s38
      %44 = dma.hbm_to_vmem [thread:$0]  %s2, 3072, %s39, [#allocation6], 256, 256, 16
    $region13: #{tpu_custom_call.1} parent=1 // pred_fallthru
      _
    // Predicated region
    $region14: #{tpu_custom_call.1} parent=1 // pred_check
      _
    $region15: #{tpu_custom_call.1} parent=1 // pred_check_branch
      %46 = sbr.rel (0) target = $region17
    $region16: #{tpu_custom_call.1} parent=1 // pred_region
      %47 = dma.done [#allocation3], 256
    $region17: #{tpu_custom_call.1} parent=1 // pred_fallthru
      _
    // Predicated region
    $region18: #{tpu_custom_call.1} parent=1 // pred_check
      _
    $region19: #{tpu_custom_call.1} parent=1 // pred_check_branch
      %49 = sbr.rel (0) target = $region21
    $region20: #{tpu_custom_call.1} parent=1 // pred_region
      %50 = dma.done [#allocation6], 1792
    $region21: #{tpu_custom_call.1} parent=1 // pred_fallthru
      _
    // Predicated region
    $region22: #{tpu_custom_call.1} parent=1 // pred_check
      _
    $region23: #{tpu_custom_call.1} parent=1 // pred_check_branch
      %52 = sbr.rel (0) target = $region25
    $region24: #{tpu_custom_call.1} parent=1 // pred_region
      %53 = dma.done [#allocation6], 3072
    $region25: #{tpu_custom_call.1} parent=1 // pred_fallthru
      _
    %v54 = vld [vmem:[#allocation5] sm:$0xff]
    %v55 = vld [vmem:[#allocation5 + $0x8] sm:$0xff]
    %v56 = vld [vmem:[#allocation5 + $0x10] sm:$0xff]
    %v57 = vld [vmem:[#allocation5 + $0x18] sm:$0xff]
    %v58 = vld [vmem:[#allocation5 + $0x20] sm:$0xff]
    %v59 = vld [vmem:[#allocation5 + $0x28] sm:$0xff]
    %v60 = vld [vmem:[#allocation5 + $0x30] sm:$0xff]
    %v61 = vld [vmem:[#allocation5 + $0x38] sm:$0xff]
    %v62 = vld [vmem:[#allocation5 + $0x40] sm:$0xff]
    %v63 = vld [vmem:[#allocation5 + $0x48] sm:$0xff]
    %v64 = vld [vmem:[#allocation5 + $0x50] sm:$0xff]
    %v65 = vld [vmem:[#allocation5 + $0x58] sm:$0xff]
    %v66 = vld [vmem:[#allocation5 + $0x60] sm:$0xff]
    %v67 = vld [vmem:[#allocation5 + $0x68] sm:$0xff]
    %v68 = vld [vmem:[#allocation7] sm:$0xff]
    %v69 = vld [vmem:[#allocation7 + $0x8] sm:$0xff]
    %v70 = vld [vmem:[#allocation7 + $0x10] sm:$0xff]
    %v71 = vld [vmem:[#allocation7 + $0x18] sm:$0xff]
    %v72 = vld [vmem:[#allocation7 + $0x20] sm:$0xff]
    %v73 = vld [vmem:[#allocation7 + $0x28] sm:$0xff]
    %v74 = vld [vmem:[#allocation7 + $0x80] sm:$0xff]
    %v75 = vld [vmem:[#allocation7 + $0x88] sm:$0xff]
    %v76 = vld [vmem:[#allocation7 + $0x90] sm:$0xff]
    %v77 = vld [vmem:[#allocation7 + $0x98] sm:$0xff]
    %v78 = vld [vmem:[#allocation7 + $0xa0] sm:$0xff]
    %v79 = vld [vmem:[#allocation7 + $0xa8] sm:$0xff]
    %v80 = vld [vmem:[#allocation7 + $0xb0] sm:$0xff]
    %v81 = vld [vmem:[#allocation7 + $0xb8] sm:$0xff]
    %v82 = vld [vmem:[#allocation2] ss:$8 sm:$0x3]
    %s83 = scalar_lea.vmem [#allocation2], 1
    %v84 = vld [vmem:[%s83] ss:$8 sm:$0x3]
    %s85 = scalar_lea.vmem [#allocation2], 2
    %v86 = vld [vmem:[%s85] ss:$8 sm:$0x3]
    %vm87 = vcmp.gt.f32.partialorder %v86, 0.5
    %v88 = vmax.f32 %v68, %v72
    %v89 = vmax.f32 %v88, %v70
    %v90 = vmax.f32 %v69, %v73
    %v91 = vmax.f32 %v90, %v71
    %vm92 = vcmp.gt.f32.partialorder %v89, 0.0
    %vm93 = vcmp.gt.f32.partialorder %v91, 0.0
    %v94 = vsel %vm92, 1, 0
    %v95 = vsel %vm93, 1, 0
    %v96 = vcvt.s32.f32 %v94
    %v97 = vcvt.s32.f32 %v95
    %v98 = vadd.f32 %v96, %v97
    %99 = vadd.xlane.f32.xlu0 %v98
    %v100 = vpop.xlane.xlu0 %99
    %v101 = vmax.f32 %v100, 0.0009765625
    %v102 = vxor.u32 %v54, 2147483648
    %v103 = vxor.u32 %v55, 2147483648
    %v104 = vxor.u32 %v56, 2147483648
    %v105 = vxor.u32 %v57, 2147483648
    %v106 = vxor.u32 %v58, 2147483648
    %v107 = vxor.u32 %v59, 2147483648
    %v108 = vmul.f32 %v102, 1.442695
    %v109 = vpow.pop %v108
    %v110 = vmul.f32 %v103, 1.442695
    %v111 = vpow.pop %v110
    %v112 = vmul.f32 %v104, 1.442695
    %v113 = vpow.pop %v112
    %v114 = vmul.f32 %v105, 1.442695
    %v115 = vpow.pop %v114
    %v116 = vmul.f32 %v106, 1.442695
    %v117 = vpow.pop %v116
    %v118 = vmul.f32 %v107, 1.442695
    %v119 = vpow.pop %v118
    %v120 = vadd.f32 %v109, 1.0
    %v121 = vadd.f32 %v111, 1.0
    %v122 = vadd.f32 %v113, 1.0
    %v123 = vadd.f32 %v115, 1.0
    %v124 = vadd.f32 %v117, 1.0
    %v125 = vadd.f32 %v119, 1.0
    %v126 = vrcp.pop %v120
    %v127 = vmul.f32 1.0, %v126
    %v128 = vrcp.pop %v121
    %v129 = vmul.f32 1.0, %v128
    %v130 = vrcp.pop %v122
    %v131 = vmul.f32 1.0, %v130
    %v132 = vrcp.pop %v123
    %v133 = vmul.f32 1.0, %v132
    %v134 = vrcp.pop %v124
    %v135 = vmul.f32 1.0, %v134
    %v136 = vrcp.pop %v125
    %v137 = vmul.f32 1.0, %v136
    %v138 = vand.u32 2147483647, %v54
    %v139 = vand.u32 2147483647, %v55
    %v140 = vand.u32 2147483647, %v56
    %v141 = vand.u32 2147483647, %v57
    %v142 = vand.u32 2147483647, %v58
    %v143 = vand.u32 2147483647, %v59
    %v144 = vsub.f32 0.0, %v138
    %v145 = vsub.f32 0.0, %v139
    %v146 = vsub.f32 0.0, %v140
    %v147 = vsub.f32 0.0, %v141
    %v148 = vsub.f32 0.0, %v142
    %v149 = vsub.f32 0.0, %v143
    %v150 = vmul.f32 %v144, 1.442695
    %v151 = vpow.pop %v150
    %v152 = vmul.f32 %v145, 1.442695
    %v153 = vpow.pop %v152
    %v154 = vmul.f32 %v146, 1.442695
    %v155 = vpow.pop %v154
    %v156 = vmul.f32 %v147, 1.442695
    %v157 = vpow.pop %v156
    %v158 = vmul.f32 %v148, 1.442695
    %v159 = vpow.pop %v158
    %v160 = vmul.f32 %v149, 1.442695
    %v161 = vpow.pop %v160
    %v162 = vadd.f32 %v151, 1.0
    %v163 = vadd.f32 %v153, 1.0
    %v164 = vadd.f32 %v155, 1.0
    %v165 = vadd.f32 %v157, 1.0
    %v166 = vadd.f32 %v159, 1.0
    %v167 = vadd.f32 %v161, 1.0
    %v168 = vlog2.pop %v162
    %v169 = vmul.f32 %v168, 0.6931472
    %v170 = vlog2.pop %v163
    %v171 = vmul.f32 %v170, 0.6931472
    %v172 = vlog2.pop %v164
    %v173 = vmul.f32 %v172, 0.6931472
    %v174 = vlog2.pop %v165
    %v175 = vmul.f32 %v174, 0.6931472
    %v176 = vlog2.pop %v166
    %v177 = vmul.f32 %v176, 0.6931472
    %v178 = vlog2.pop %v167
    %v179 = vmul.f32 %v178, 0.6931472
    %v180 = vmin.f32 %v54, 0.0
    %v181 = vmin.f32 %v55, 0.0
    %v182 = vmin.f32 %v56, 0.0
    %v183 = vmin.f32 %v57, 0.0
    %v184 = vmin.f32 %v58, 0.0
    %v185 = vmin.f32 %v59, 0.0
    %v186 = vsub.f32 %v180, %v169
    %v187 = vsub.f32 %v181, %v171
    %v188 = vsub.f32 %v182, %v173
    %v189 = vsub.f32 %v183, %v175
    %v190 = vsub.f32 %v184, %v177
    %v191 = vsub.f32 %v185, %v179
    %v192 = vmax.f32 %v54, 0.0
    %v193 = vmax.f32 %v55, 0.0
    %v194 = vmax.f32 %v56, 0.0
    %v195 = vmax.f32 %v57, 0.0
    %v196 = vmax.f32 %v58, 0.0
    %v197 = vmax.f32 %v59, 0.0
    %v198 = vsub.f32 0.0, %v192
    %v199 = vsub.f32 0.0, %v193
    %v200 = vsub.f32 0.0, %v194
    %v201 = vsub.f32 0.0, %v195
    %v202 = vsub.f32 0.0, %v196
    %v203 = vsub.f32 0.0, %v197
    %v204 = vsub.f32 %v198, %v169
    %v205 = vsub.f32 %v199, %v171
    %v206 = vsub.f32 %v200, %v173
    %v207 = vsub.f32 %v201, %v175
    %v208 = vsub.f32 %v202, %v177
    %v209 = vsub.f32 %v203, %v179
    %v210 = vsub.f32 1.0, %v127
    %v211 = vsub.f32 1.0, %v129
    %v212 = vsub.f32 1.0, %v131
    %v213 = vsub.f32 1.0, %v133
    %v214 = vsub.f32 1.0, %v135
    %v215 = vsub.f32 1.0, %v137
    %v216 = vmul.f32 %v210, %v210
    %v217 = vmul.f32 %v211, %v211
    %v218 = vmul.f32 %v212, %v212
    %v219 = vmul.f32 %v213, %v213
    %v220 = vmul.f32 %v214, %v214
    %v221 = vmul.f32 %v215, %v215
    %v222 = vmul.f32 %v216, -0.75
    %v223 = vmul.f32 %v217, -0.75
    %v224 = vmul.f32 %v218, -0.75
    %v225 = vmul.f32 %v219, -0.75
    %v226 = vmul.f32 %v220, -0.75
    %v227 = vmul.f32 %v221, -0.75
    %v228 = vmul.f32 %v222, %v186
    %v229 = vmul.f32 %v223, %v187
    %v230 = vmul.f32 %v224, %v188
    %v231 = vmul.f32 %v225, %v189
    %v232 = vmul.f32 %v226, %v190
    %v233 = vmul.f32 %v227, %v191
    %v234 = vmul.f32 %v228, %v68
    %v235 = vmul.f32 %v229, %v69
    %v236 = vmul.f32 %v230, %v70
    %v237 = vmul.f32 %v231, %v71
    %v238 = vmul.f32 %v232, %v72
    %v239 = vmul.f32 %v233, %v73
    %v240 = vmul.f32 %v234, %v96
    %v241 = vmul.f32 %v235, %v97
    %v242 = vmul.f32 %v236, %v96
    %v243 = vmul.f32 %v237, %v97
    %v244 = vmul.f32 %v238, %v96
    %v245 = vmul.f32 %v239, %v97
    %v246 = vmul.f32 %v127, %v127
    %v247 = vmul.f32 %v129, %v129
    %v248 = vmul.f32 %v131, %v131
    %v249 = vmul.f32 %v133, %v133
    %v250 = vmul.f32 %v135, %v135
    %v251 = vmul.f32 %v137, %v137
    %v252 = vmul.f32 %v246, -0.25
    %v253 = vmul.f32 %v247, -0.25
    %v254 = vmul.f32 %v248, -0.25
    %v255 = vmul.f32 %v249, -0.25
    %v256 = vmul.f32 %v250, -0.25
    %v257 = vmul.f32 %v251, -0.25
    %v258 = vmul.f32 %v252, %v204
    %v259 = vmul.f32 %v253, %v205
    %v260 = vmul.f32 %v254, %v206
    %v261 = vmul.f32 %v255, %v207
    %v262 = vmul.f32 %v256, %v208
    %v263 = vmul.f32 %v257, %v209
    %v264 = vsub.f32 1.0, %v68
    %v265 = vsub.f32 1.0, %v69
    %v266 = vsub.f32 1.0, %v70
    %v267 = vsub.f32 1.0, %v71
    %v268 = vsub.f32 1.0, %v72
    %v269 = vsub.f32 1.0, %v73
    %v270 = vmul.f32 %v258, %v264
    %v271 = vmul.f32 %v259, %v265
    %v272 = vmul.f32 %v260, %v266
    %v273 = vmul.f32 %v261, %v267
    %v274 = vmul.f32 %v262, %v268
    %v275 = vmul.f32 %v263, %v269
    %v276 = vsub.f32 1.0, %v96
    %v277 = vsub.f32 1.0, %v97
    %v279 = vlaneseq
    %v280 = vshrl.u32 %v279, 7
    %v281 = vsub.s32 0, %v280
    %v282 = vrot.slane %v86, %v281
    %v283 = vlaneseq
    %v284 = vshrl.u32 %v283, 7
    %v285 = vsub.s32 1, %v284
    %v286 = vrot.slane %v86, %v285
    %v289 = vmul.f32 %v276, %v282
    %v290 = vmul.f32 %v277, %v286
    %v291 = vmul.f32 %v270, %v289
    %v292 = vmul.f32 %v271, %v290
    %v293 = vmul.f32 %v272, %v289
    %v294 = vmul.f32 %v273, %v290
    %v295 = vmul.f32 %v274, %v289
    %v296 = vmul.f32 %v275, %v290
    %v297 = vadd.f32 %v240, %v242
    %v298 = vadd.f32 %v297, %v244
    %v299 = vadd.f32 %v241, %v243
    %v300 = vadd.f32 %v299, %v245
    %v301 = vadd.f32 %v298, %v300
    %302 = vadd.xlane.f32.xlu0 %v301
    %v303 = vpop.xlane.xlu0 %302
    %v304 = vadd.f32 %v291, %v293
    %v305 = vadd.f32 %v304, %v295
    %v306 = vadd.f32 %v292, %v294
    %v307 = vadd.f32 %v306, %v296
    %v308 = vadd.f32 %v305, %v307
    %309 = vadd.xlane.f32.xlu0 %v308
    %v310 = vpop.xlane.xlu0 %309
    %v311 = vxor.u32 %v60, 2147483648
    %v312 = vxor.u32 %v61, 2147483648
    %v313 = vmul.f32 %v311, 1.442695
    %v314 = vpow.pop %v313
    %v315 = vmul.f32 %v312, 1.442695
    %v316 = vpow.pop %v315
    %v317 = vadd.f32 %v314, 1.0
    %v318 = vadd.f32 %v316, 1.0
    %v319 = vrcp.pop %v317
    %v320 = vmul.f32 1.0, %v319
    %v321 = vrcp.pop %v318
    %v322 = vmul.f32 1.0, %v321
    %v324 = vlaneseq
    %v325 = vshrl.u32 %v324, 7
    %v326 = vsub.s32 0, %v325
    %v327 = vrot.slane %v82, %v326
    %v328 = vlaneseq
    %v329 = vshrl.u32 %v328, 7
    %v330 = vsub.s32 1, %v329
    %v331 = vrot.slane %v82, %v330
    %v334 = vadd.f32 %v320, %v327
    %v335 = vadd.f32 %v322, %v331
    %v336 = vmul.f32 %v334, 0.07692308
    %v337 = vmul.f32 %v335, 0.07692308
    %v338 = vxor.u32 %v62, 2147483648
    %v339 = vxor.u32 %v63, 2147483648
    %v340 = vmul.f32 %v338, 1.442695
    %v341 = vpow.pop %v340
    %v342 = vmul.f32 %v339, 1.442695
    %v343 = vpow.pop %v342
    %v344 = vadd.f32 %v341, 1.0
    %v345 = vadd.f32 %v343, 1.0
    %v346 = vrcp.pop %v344
    %v347 = vmul.f32 1.0, %v346
    %v348 = vrcp.pop %v345
    %v349 = vmul.f32 1.0, %v348
    %v351 = vlaneseq
    %v352 = vshrl.u32 %v351, 7
    %v353 = vsub.s32 0, %v352
    %v354 = vrot.slane %v84, %v353
    %v355 = vlaneseq
    %v356 = vshrl.u32 %v355, 7
    %v357 = vsub.s32 1, %v356
    %v358 = vrot.slane %v84, %v357
    %v361 = vadd.f32 %v347, %v354
    %v362 = vadd.f32 %v349, %v358
    %v363 = vmul.f32 %v361, 0.07692308
    %v364 = vmul.f32 %v362, 0.07692308
    %v365 = vmul.f32 %v64, 1.442695
    %v366 = vpow.pop %v365
    %v367 = vmul.f32 %v65, 1.442695
    %v368 = vpow.pop %v367
    %v369 = vmul.f32 %v366, 0.07692308
    %v370 = vmul.f32 %v368, 0.07692308
    %v371 = vmul.f32 %v66, 1.442695
    %v372 = vpow.pop %v371
    %v373 = vmul.f32 %v67, 1.442695
    %v374 = vpow.pop %v373
    %v375 = vmul.f32 %v372, 0.07692308
    %v376 = vmul.f32 %v374, 0.07692308
    %v377 = vmul.f32 %v369, 0.5
    %v378 = vmul.f32 %v370, 0.5
    %v379 = vmul.f32 %v375, 0.5
    %v380 = vmul.f32 %v376, 0.5
    %v381 = vsub.f32 %v336, %v377
    %v382 = vsub.f32 %v337, %v378
    %v383 = vsub.f32 %v363, %v379
    %v384 = vsub.f32 %v364, %v380
    %v385 = vadd.f32 %v336, %v377
    %v386 = vadd.f32 %v337, %v378
    %v387 = vadd.f32 %v363, %v379
    %v388 = vadd.f32 %v364, %v380
    %v389 = vmin.f32 %v385, %v78
    %v390 = vmin.f32 %v386, %v79
    %v391 = vmax.f32 %v381, %v74
    %v392 = vmax.f32 %v382, %v75
    %v393 = vsub.f32 %v389, %v391
    %v394 = vsub.f32 %v390, %v392
    %v395 = vmax.f32 %v393, 0.0
    %v396 = vmax.f32 %v394, 0.0
    %v397 = vmin.f32 %v387, %v80
    %v398 = vmin.f32 %v388, %v81
    %v399 = vmax.f32 %v383, %v76
    %v400 = vmax.f32 %v384, %v77
    %v401 = vsub.f32 %v397, %v399
    %v402 = vsub.f32 %v398, %v400
    %v403 = vmax.f32 %v401, 0.0
    %v404 = vmax.f32 %v402, 0.0
    %v405 = vmul.f32 %v395, %v403
    %v406 = vmul.f32 %v396, %v404
    %v407 = vsub.f32 %v78, %v74
    %v408 = vsub.f32 %v79, %v75
    %v409 = vsub.f32 %v80, %v76
    %v410 = vsub.f32 %v81, %v77
    %v411 = vmul.f32 %v369, %v375
    %v412 = vmul.f32 %v370, %v376
    %v413 = vmul.f32 %v407, %v409
    %v414 = vmul.f32 %v408, %v410
    %v415 = vadd.f32 %v411, %v413
    %v416 = vadd.f32 %v412, %v414
    %v417 = vsub.f32 %v415, %v405
    %v418 = vsub.f32 %v416, %v406
    %v419 = vadd.f32 %v417, 1e-07
    %v420 = vadd.f32 %v418, 1e-07
    %v421 = vrcp.pop %v419
    %v422 = vmul.f32 %v405, %v421
    %v423 = vrcp.pop %v420
    %v424 = vmul.f32 %v406, %v423
    %v425 = vmax.f32 %v385, %v78
    %v426 = vmax.f32 %v386, %v79
    %v427 = vmin.f32 %v381, %v74
    %v428 = vmin.f32 %v382, %v75
    %v429 = vsub.f32 %v425, %v427
    %v430 = vsub.f32 %v426, %v428
    %v431 = vmax.f32 %v387, %v80
    %v432 = vmax.f32 %v388, %v81
    %v433 = vmin.f32 %v383, %v76
    %v434 = vmin.f32 %v384, %v77
    %v435 = vsub.f32 %v431, %v433
    %v436 = vsub.f32 %v432, %v434
    %v437 = vmul.f32 %v429, %v429
    %v438 = vmul.f32 %v430, %v430
    %v439 = vmul.f32 %v435, %v435
    %v440 = vmul.f32 %v436, %v436
    %v441 = vadd.f32 %v437, %v439
    %v442 = vadd.f32 %v438, %v440
    %v443 = vadd.f32 %v441, 1e-07
    %v444 = vadd.f32 %v442, 1e-07
    %v445 = vadd.f32 %v74, %v78
    %v446 = vadd.f32 %v75, %v79
    %v447 = vmul.f32 %v445, 0.5
    %v448 = vmul.f32 %v446, 0.5
    %v449 = vadd.f32 %v76, %v80
    %v450 = vadd.f32 %v77, %v81
    %v451 = vmul.f32 %v449, 0.5
    %v452 = vmul.f32 %v450, 0.5
    %v453 = vsub.f32 %v447, %v336
    %v454 = vsub.f32 %v448, %v337
    %v455 = vmul.f32 %v453, %v453
    %v456 = vmul.f32 %v454, %v454
    %v457 = vsub.f32 %v451, %v363
    %v458 = vsub.f32 %v452, %v364
    %v459 = vmul.f32 %v457, %v457
    %v460 = vmul.f32 %v458, %v458
    %v461 = vadd.f32 %v455, %v459
    %v462 = vadd.f32 %v456, %v460
    %v463 = vmax.f32 %v409, 1e-09
    %v464 = vmax.f32 %v410, 1e-09
    %v465 = vrcp.pop %v463
    %v466 = vmul.f32 %v407, %v465
    %v467 = vrcp.pop %v464
    %v468 = vmul.f32 %v408, %v467
    %vm469 = vcmp.lt.f32.partialorder %v466, 0.0
    %vm470 = vcmp.lt.f32.partialorder %v468, 0.0
    %v471 = vsel %vm469, -1.0, 1.0
    %v472 = vsel %vm470, -1.0, 1.0
    %v473 = vand.u32 2147483647, %v466
    %v474 = vand.u32 2147483647, %v468
    %vm475 = vcmp.gt.f32.partialorder %v473, 2.4142137
    %vm476 = vcmp.gt.f32.partialorder %v474, 2.4142137
    %vm477 = vcmp.gt.f32.partialorder %v473, 0.41421357
    %vm478 = vcmp.gt.f32.partialorder %v474, 0.41421357
    %v479 = vsel %vm477, 0.7853982, 0.0
    %v480 = vsel %vm478, 0.7853982, 0.0
    %v481 = vsel %vm475, 1.5707964, %v479
    %v482 = vsel %vm476, 1.5707964, %v480
    %v483 = vmax.f32 %v473, 1e-30
    %v484 = vmax.f32 %v474, 1e-30
    %v485 = vrcp.pop %v483
    %v486 = vmul.f32 -1.0, %v485
    %v487 = vrcp.pop %v484
    %v488 = vmul.f32 -1.0, %v487
    %v489 = vsub.f32 %v473, 1.0
    %v490 = vsub.f32 %v474, 1.0
    %v491 = vadd.f32 %v473, 1.0
    %v492 = vadd.f32 %v474, 1.0
    %v493 = vrcp.pop %v491
    %v494 = vmul.f32 %v489, %v493
    %v495 = vrcp.pop %v492
    %v496 = vmul.f32 %v490, %v495
    %v497 = vsel %vm477, %v494, %v473
    %v498 = vsel %vm478, %v496, %v474
    %v499 = vsel %vm475, %v486, %v497
    %v500 = vsel %vm476, %v488, %v498
    %v501 = vmul.f32 %v499, %v499
    %v502 = vmul.f32 %v500, %v500
    %v503 = vmul.f32 %v501, 0.080537446
    %v504 = vmul.f32 %v502, 0.080537446
    %v505 = vsub.f32 %v503, 0.13877685
    %v506 = vsub.f32 %v504, 0.13877685
    %v507 = vmul.f32 %v505, %v501
    %v508 = vmul.f32 %v506, %v502
    %v509 = vadd.f32 %v507, 0.19977711
    %v510 = vadd.f32 %v508, 0.19977711
    %v511 = vmul.f32 %v509, %v501
    %v512 = vmul.f32 %v510, %v502
    %v513 = vsub.f32 %v511, 0.3333295
    %v514 = vsub.f32 %v512, 0.3333295
    %v515 = vmul.f32 %v513, %v501
    %v516 = vmul.f32 %v514, %v502
    %v517 = vmul.f32 %v515, %v499
    %v518 = vmul.f32 %v516, %v500
    %v519 = vadd.f32 %v481, %v517
    %v520 = vadd.f32 %v482, %v518
    %v521 = vadd.f32 %v519, %v499
    %v522 = vadd.f32 %v520, %v500
    %v523 = vmul.f32 %v471, %v521
    %v524 = vmul.f32 %v472, %v522
    %v525 = vmax.f32 %v375, 1e-09
    %v526 = vmax.f32 %v376, 1e-09
    %v527 = vrcp.pop %v525
    %v528 = vmul.f32 %v369, %v527
    %v529 = vrcp.pop %v526
    %v530 = vmul.f32 %v370, %v529
    %vm531 = vcmp.lt.f32.partialorder %v528, 0.0
    %vm532 = vcmp.lt.f32.partialorder %v530, 0.0
    %v533 = vsel %vm531, -1.0, 1.0
    %v534 = vsel %vm532, -1.0, 1.0
    %v535 = vand.u32 2147483647, %v528
    %v536 = vand.u32 2147483647, %v530
    %vm537 = vcmp.gt.f32.partialorder %v535, 2.4142137
    %vm538 = vcmp.gt.f32.partialorder %v536, 2.4142137
    %vm539 = vcmp.gt.f32.partialorder %v535, 0.41421357
    %vm540 = vcmp.gt.f32.partialorder %v536, 0.41421357
    %v541 = vsel %vm539, 0.7853982, 0.0
    %v542 = vsel %vm540, 0.7853982, 0.0
    %v543 = vsel %vm537, 1.5707964, %v541
    %v544 = vsel %vm538, 1.5707964, %v542
    %v545 = vmax.f32 %v535, 1e-30
    %v546 = vmax.f32 %v536, 1e-30
    %v547 = vrcp.pop %v545
    %v548 = vmul.f32 -1.0, %v547
    %v549 = vrcp.pop %v546
    %v550 = vmul.f32 -1.0, %v549
    %v551 = vsub.f32 %v535, 1.0
    %v552 = vsub.f32 %v536, 1.0
    %v553 = vadd.f32 %v535, 1.0
    %v554 = vadd.f32 %v536, 1.0
    %v555 = vrcp.pop %v553
    %v556 = vmul.f32 %v551, %v555
    %v557 = vrcp.pop %v554
    %v558 = vmul.f32 %v552, %v557
    %v559 = vsel %vm539, %v556, %v535
    %v560 = vsel %vm540, %v558, %v536
    %v561 = vsel %vm537, %v548, %v559
    %v562 = vsel %vm538, %v550, %v560
    %v563 = vmul.f32 %v561, %v561
    %v564 = vmul.f32 %v562, %v562
    %v565 = vmul.f32 %v563, 0.080537446
    %v566 = vmul.f32 %v564, 0.080537446
    %v567 = vsub.f32 %v565, 0.13877685
    %v568 = vsub.f32 %v566, 0.13877685
    %v569 = vmul.f32 %v567, %v563
    %v570 = vmul.f32 %v568, %v564
    %v571 = vadd.f32 %v569, 0.19977711
    %v572 = vadd.f32 %v570, 0.19977711
    %v573 = vmul.f32 %v571, %v563
    %v574 = vmul.f32 %v572, %v564
    %v575 = vsub.f32 %v573, 0.3333295
    %v576 = vsub.f32 %v574, 0.3333295
    %v577 = vmul.f32 %v575, %v563
    %v578 = vmul.f32 %v576, %v564
    %v579 = vmul.f32 %v577, %v561
    %v580 = vmul.f32 %v578, %v562
    %v581 = vadd.f32 %v543, %v579
    %v582 = vadd.f32 %v544, %v580
    %v583 = vadd.f32 %v581, %v561
    %v584 = vadd.f32 %v582, %v562
    %v585 = vmul.f32 %v533, %v583
    %v586 = vmul.f32 %v534, %v584
    %v587 = vsub.f32 %v523, %v585
    %v588 = vsub.f32 %v524, %v586
    %v589 = vmul.f32 %v587, %v587
    %v590 = vmul.f32 %v588, %v588
    %v591 = vmul.f32 %v589, 0.40528473
    %v592 = vmul.f32 %v590, 0.40528473
    %v593 = vsub.f32 %v591, %v422
    %v594 = vsub.f32 %v592, %v424
    %v595 = vadd.f32 %v593, 1.0000001
    %v596 = vadd.f32 %v594, 1.0000001
    %v597 = vrcp.pop %v595
    %v598 = vmul.f32 %v591, %v597
    %v599 = vrcp.pop %v596
    %v600 = vmul.f32 %v592, %v599
    %v601 = vrcp.pop %v443
    %v602 = vmul.f32 %v461, %v601
    %v603 = vrcp.pop %v444
    %v604 = vmul.f32 %v462, %v603
    %v605 = vmul.f32 %v591, %v598
    %v606 = vmul.f32 %v592, %v600
    %v607 = vadd.f32 %v602, %v605
    %v608 = vadd.f32 %v604, %v606
    %v609 = vsub.f32 %v422, %v607
    %v610 = vsub.f32 %v424, %v608
    %v611 = vsub.f32 1.0, %v609
    %v612 = vsub.f32 1.0, %v610
    %v613 = vmul.f32 %v611, %v96
    %v614 = vmul.f32 %v612, %v97
    %v615 = vadd.f32 %v613, %v614
    %616 = vadd.xlane.f32.xlu0 %v615
    %v617 = vpop.xlane.xlu0 %616
    %v618 = vmax.f32 %v127, %v135
    %v619 = vmax.f32 %v618, %v131
    %v620 = vmax.f32 %v129, %v137
    %v621 = vmax.f32 %v620, %v133
    %v622 = vmin.f32 %v127, %v135
    %v623 = vmin.f32 %v622, %v131
    %v624 = vmin.f32 %v129, %v137
    %v625 = vmin.f32 %v624, %v133
    %v626 = vadd.f32 %v127, %v131
    %v627 = vadd.f32 %v626, %v135
    %v628 = vadd.f32 %v129, %v133
    %v629 = vadd.f32 %v628, %v137
    %v630 = vsel %vm87, 1, 0
    %v631 = vlaneseq
    %v632 = vshrl.u32 %v631, 7
    %v633 = vsub.s32 0, %v632
    %v634 = vrot.slane %v630, %v633
    %v635 = vlaneseq
    %v636 = vshrl.u32 %v635, 7
    %v637 = vsub.s32 1, %v636
    %v638 = vrot.slane %v630, %v637
    %vm639 = vcmp.eq.s32.totalorder %v634, 1
    %vm640 = vcmp.eq.s32.totalorder %v638, 1
    %v641 = vsel %vm639, %v619, -1.0
    %v642 = vsel %vm640, %v621, -1.0
    %v643 = vmax.f32 %v641, %v642
    %644 = vmax.xlane.f32.xlu0 %v643
    %v645 = vpop.xlane.xlu0 %644
    %v646 = vsel %vm639, %v623, 2.0
    %v647 = vsel %vm640, %v625, 2.0
    %v648 = vmin.f32 %v646, %v647
    %649 = vmin.xlane.f32.xlu0 %v648
    %v650 = vpop.xlane.xlu0 %649
    %v651 = vmul.f32 %v627, %v282
    %v652 = vmul.f32 %v629, %v286
    %v653 = vadd.f32 %v651, %v652
    %654 = vadd.xlane.f32.xlu0 %v653
    %v655 = vpop.xlane.xlu0 %654
    %v656 = vlaneseq
    %v657 = vand.u32 %v656, 127
    %vm658 = vcmp.eq.s32.totalorder %v657, 0
    %v659 = vsel %vm658, 1, 0
    %vm660 = vcmp.eq.s32.totalorder %v659, 1
    %v661 = vsel %vm660, %v303, 0.0
    %vm662 = vcmp.eq.s32.totalorder %v657, 1
    %v663 = vsel %vm662, 1, 0
    %vm664 = vcmp.eq.s32.totalorder %v663, 1
    %v665 = vsel %vm664, %v310, %v661
    %vm666 = vcmp.eq.s32.totalorder %v657, 2
    %v667 = vsel %vm666, 1, 0
    %vm668 = vcmp.eq.s32.totalorder %v667, 1
    %v669 = vsel %vm668, %v101, %v665
    %vm670 = vcmp.eq.s32.totalorder %v657, 3
    %v671 = vsel %vm670, 1, 0
    %vm672 = vcmp.eq.s32.totalorder %v671, 1
    %v673 = vsel %vm672, %v617, %v669
    %vm674 = vcmp.eq.s32.totalorder %v657, 4
    %v675 = vsel %vm674, 1, 0
    %vm676 = vcmp.eq.s32.totalorder %v675, 1
    %v677 = vsel %vm676, %v100, %v673
    %vm678 = vcmp.eq.s32.totalorder %v657, 5
    %v679 = vsel %vm678, 1, 0
    %vm680 = vcmp.eq.s32.totalorder %v679, 1
    %v681 = vsel %vm680, %v645, %v677
    %vm682 = vcmp.eq.s32.totalorder %v657, 6
    %v683 = vsel %vm682, 1, 0
    %vm684 = vcmp.eq.s32.totalorder %v683, 1
    %v685 = vsel %vm684, %v650, %v681
    %vm686 = vcmp.eq.s32.totalorder %v657, 7
    %v687 = vsel %vm686, 1, 0
    %vm688 = vcmp.eq.s32.totalorder %v687, 1
    %v689 = vsel %vm688, %v655, %v685
    %690 = vst [vmem:[#allocation8] sm:$0xff] %v689
    // Predicated region
    $region26: #{tpu_custom_call.1} parent=1 // pred_check
      _
    $region27: #{tpu_custom_call.1} parent=1 // pred_check_branch
      %692 = sbr.rel (0) target = $region29
    $region28: #{tpu_custom_call.1} parent=1 // pred_region
      %s694 = ssub.s32 128, 128
      %695 = vsyncadd [#allocation4], %s694
      %s697 = sshll.u32 [#allocation8], 4
      %s698 = int_to_ptr.vmem [resolvable:$true] %s697
      %700 = dma.vmem_to_hbm [thread:$0]  %s698, 128, %s3, [#allocation4]
    $region29: #{tpu_custom_call.1} parent=1 // pred_fallthru
      _
    // Predicated region
    $region30: #{tpu_custom_call.1} parent=1 // pred_check
      _
    $region31: #{tpu_custom_call.1} parent=1 // pred_check_branch
      %702 = sbr.rel (0) target = $region33
    $region32: #{tpu_custom_call.1} parent=1 // pred_region
      %703 = dma.done [#allocation4], 128
    $region33: #{tpu_custom_call.1} parent=1 // pred_fallthru
      _
    %704 = vsyncpa [#allocation3], 1
    %705 = vsyncpa [#allocation6], 1
    %706 = vsyncpa [#allocation4], 1

</llo_original>
